<compile_context>
chip_gen: v6e
topology: v6e:2x2x1
jax: 0.10.0
libtpu: 0.0.40
codegen_flags: <defaults>
</compile_context>

<pallas_src>
import functools

import jax
import jax.numpy as jnp
from jax.experimental import pallas as pl
from jax.experimental.pallas import tpu as pltpu


def _round_up(x, m):
    return (x + m - 1) // m * m


# --------------------------------------------------------------------------
# Pallas kernel: tiled  (patches_bf16 @ Wscaled_bf16) -> f32 acc -> +bias ->
# LeakyReLU(0.1)
# --------------------------------------------------------------------------
def _conv_bn_lrelu_kernel(p_ref, w_ref, b_ref, o_ref, acc_ref):
    # p_ref   : (TM, TK)  bf16 im2col tile
    # w_ref   : (TK, TN)  bf16 weight tile (BN scale folded into columns)
    # b_ref   : (1,  TN)  f32 folded bias
    # o_ref   : (TM, TN)  f32 output tile
    # acc_ref : (TM, TN)  f32 accumulator scratch (persists across K steps)
    k = pl.program_id(2)

    @pl.when(k == 0)
    def _init():
        acc_ref[...] = jnp.zeros_like(acc_ref)

    acc_ref[...] += jnp.dot(p_ref[...], w_ref[...],
                            preferred_element_type=jnp.float32)

    @pl.when(k == pl.num_programs(2) - 1)
    def _finalize():
        y = acc_ref[...] + b_ref[...]
        o_ref[...] = jnp.maximum(y, 0.1 * y).astype(o_ref.dtype)


def _pallas_conv_bn_lrelu(patches, w_scaled, bias):
    """patches: (Mp, Kp) bf16, w_scaled: (Kp, Cop) bf16, bias: (1, Cop) f32."""
    Mp, Kp = patches.shape
    _, Cop = w_scaled.shape

    # Tile sizes: lane-dense / MXU-friendly, modest enough for v7x's 64 MiB VMEM.
    TM = min(256, Mp)
    TN = min(256, Cop)
    TK = min(512, Kp)
    assert Mp % TM == 0 and Cop % TN == 0 and Kp % TK == 0

    grid = (Mp // TM, Cop // TN, Kp // TK)

    # Generous but explicit scoped-VMEM budget (double-buffered tiles + acc).
    tile_bytes = 2 * (TM * TK * 2 + TK * TN * 2 + TM * TN * 4 + TN * 4) + TM * TN * 4
    vmem_limit = int(min(max(4 * tile_bytes, 16 << 20), 64 << 20))

    cost = pl.CostEstimate(
        flops=2 * Mp * Kp * Cop,
        transcendentals=0,
        bytes_accessed=Mp * Kp * 2 + Kp * Cop * 2 + Cop * 4 + Mp * Cop * 4,
    )

    return pl.pallas_call(
        _conv_bn_lrelu_kernel,
        out_shape=jax.ShapeDtypeStruct((Mp, Cop), jnp.float32),
        grid_spec=pltpu.PrefetchScalarGridSpec(
            num_scalar_prefetch=0,
            grid=grid,
            in_specs=[
                pl.BlockSpec((TM, TK), lambda i, j, k: (i, k)),
                pl.BlockSpec((TK, TN), lambda i, j, k: (k, j)),
                pl.BlockSpec((1, TN), lambda i, j, k: (0, j)),
            ],
            out_specs=pl.BlockSpec((TM, TN), lambda i, j, k: (i, j)),
            scratch_shapes=[pltpu.VMEM((TM, TN), jnp.float32)],
        ),
        compiler_params=pltpu.CompilerParams(
            dimension_semantics=("parallel", "parallel", "arbitrary"),
            vmem_limit_bytes=vmem_limit,
        ),
        cost_estimate=cost,
    )(patches, w_scaled, bias)


# --------------------------------------------------------------------------
# ConverlutionalLayer forward (glue in plain JAX, hot path in Pallas)
# --------------------------------------------------------------------------
def conv_bn_lrelu_layer(x_nchw, params, kernel_size, stride, padding):
    """x_nchw: (N, Cin, H, W) f32 -> (N, Cout, Ho, Wo) f32."""
    w = params["conv_w"]          # (Cout, Cin, kh, kw)  PyTorch layout
    b = params["conv_b"]          # (Cout,)
    gamma = params["bn_gamma"]    # (Cout,)
    beta = params["bn_beta"]      # (Cout,)
    mean = params["bn_mean"]      # (Cout,)
    var = params["bn_var"]        # (Cout,)
    eps = 1e-5

    N, Cin, H, W = x_nchw.shape
    Cout, _, kh, kw = w.shape
    Ho = (H + 2 * padding - kh) // stride + 1
    Wo = (W + 2 * padding - kw) // stride + 1

    # NCHW -> NHWC, spatial zero-pad.
    x = jnp.transpose(x_nchw, (0, 2, 3, 1))
    x_pad = jnp.pad(x, ((0, 0), (padding, padding), (padding, padding), (0, 0)))

    # im2col: (N, Ho, Wo, kh*kw, Cin) -> (M, K) in bf16 (halves HBM traffic).
    taps = []
    for ky in range(kh):
        for kx in range(kw):
            taps.append(
                x_pad[:, ky:ky + stride * Ho:stride, kx:kx + stride * Wo:stride, :])
    patches = jnp.stack(taps, axis=3).reshape(N * Ho * Wo, kh * kw * Cin)
    patches = patches.astype(jnp.bfloat16)

    M, K = patches.shape

    # Fold BN into the weights/bias:
    #   scale = gamma / sqrt(var+eps)
    #   y = x @ (W * scale) + ((b - mean) * scale + beta)
    scale = gamma / jnp.sqrt(var + eps)                          # (Cout,)
    bias = (b - mean) * scale + beta                             # (Cout,)
    w_mat = jnp.transpose(w, (2, 3, 1, 0)).reshape(K, Cout)      # (K, Cout)
    w_scaled = (w_mat * scale[None, :]).astype(jnp.bfloat16)

    # Pad to MXU / vreg-aligned, lane-dense shapes.
    TM = min(256, _round_up(M, 8))
    TN = min(256, _round_up(Cout, 128))
    TK = min(512, _round_up(K, 128))
    Mp = _round_up(M, TM)
    Cop = _round_up(Cout, TN)
    Kp = _round_up(K, TK)

    patches_p = jnp.pad(patches, ((0, Mp - M), (0, Kp - K)))
    w_p = jnp.pad(w_scaled, ((0, Kp - K), (0, Cop - Cout)))
    bias_p = jnp.pad(bias.astype(jnp.float32), (0, Cop - Cout)).reshape(1, Cop)

    out_flat = _pallas_conv_bn_lrelu(patches_p, w_p, bias_p)     # (Mp, Cop) f32

    out = out_flat[:M, :Cout].reshape(N, Ho, Wo, Cout)
    return jnp.transpose(out, (0, 3, 1, 2))                      # NCHW


# --------------------------------------------------------------------------
# Reference (pure JAX, f32) for correctness check
# --------------------------------------------------------------------------
def conv_bn_lrelu_ref(x_nchw, params, kernel_size, stride, padding):
    w = params["conv_w"]
    b = params["conv_b"]
    eps = 1e-5
    y = jax.lax.conv_general_dilated(
        x_nchw, w, window_strides=(stride, stride),
        padding=((padding, padding), (padding, padding)),
        dimension_numbers=("NCHW", "OIHW", "NCHW"))
    y = y + b[None, :, None, None]
    scale = params["bn_gamma"] / jnp.sqrt(params["bn_var"] + eps)
    y = (y - params["bn_mean"][None, :, None, None]) * scale[None, :, None, None]
    y = y + params["bn_beta"][None, :, None, None]
    return jnp.where(y > 0, y, 0.1 * y)


# --------------------------------------------------------------------------
if __name__ == "__main__":
    N, Cin, H, W = 2, 4, 16, 16
    Cout = 8

    key = jax.random.PRNGKey(0)
    kx, kw_, kb = jax.random.split(key, 3)

    x = jax.random.normal(kx, (N, Cin, H, W), dtype=jnp.float32)

    # Exercise two configs of the module: stride-2 downsample and stride-1 conv.
    for (ksz, stride, pad) in [(3, 2, 1), (3, 1, 1)]:
        params = {
            "conv_w": jax.random.normal(kw_, (Cout, Cin, ksz, ksz), jnp.float32) * 0.1,
            "conv_b": jax.random.normal(kb, (Cout,), jnp.float32) * 0.1,
            "bn_gamma": 1.0 + 0.1 * jnp.arange(Cout, dtype=jnp.float32),
            "bn_beta": 0.05 * jnp.arange(Cout, dtype=jnp.float32),
            "bn_mean": 0.01 * jnp.arange(Cout, dtype=jnp.float32),
            "bn_var": 1.0 + 0.02 * jnp.arange(Cout, dtype=jnp.float32),
        }

        fwd = jax.jit(functools.partial(
            conv_bn_lrelu_layer, params=params,
            kernel_size=ksz, stride=stride, padding=pad))
        out = jax.block_until_ready(fwd(x))

        ref = jax.block_until_ready(
            conv_bn_lrelu_ref(x, params, ksz, stride, pad))

        Ho = (H + 2 * pad - ksz) // stride + 1
        Wo = (W + 2 * pad - ksz) // stride + 1
        assert out.shape == (N, Cout, Ho, Wo), out.shape
        # bf16 operands (f32 accumulation) -> loosened tolerance vs f32 ref.
        max_err = float(jnp.max(jnp.abs(out - ref)))
        assert max_err < 2e-2, max_err

    print("KERNEL_OK")
</pallas_src>

<mosaic_0001>
module attributes {stable_mosaic.version = 11 : i64} {
  func.func @_conv_bn_lrelu_kernel(%arg0: i32, %arg1: i32, %arg2: i32, %arg3: memref<128x128xbf16, #tpu.memory_space<vmem>>, %arg4: memref<128x128xbf16, #tpu.memory_space<vmem>>, %arg5: memref<1x128xf32, #tpu.memory_space<vmem>>, %arg6: memref<128x128xf32, #tpu.memory_space<vmem>>, %arg7: memref<128x128xf32, #tpu.memory_space<vmem>>) attributes {dimension_semantics = [#tpu.dimension_semantics<parallel>, #tpu.dimension_semantics<parallel>, #tpu.dimension_semantics<arbitrary>], iteration_bounds = array<i64: 1, 1, 1>, scalar_prefetch = 0 : i64, scratch_operands = 1 : i64, tpu.core_type = #tpu.core_type<tc>, window_params = [{transform_indices = @transform_0, window_bounds = array<i64: 128, 128>}, {transform_indices = @transform_1, window_bounds = array<i64: 128, 128>}, {transform_indices = @transform_2, window_bounds = array<i64: 1, 128>}, {transform_indices = @transform_3, window_bounds = array<i64: 128, 128>}]} {
    %c0_i32 = arith.constant 0 : i32
    %0 = arith.cmpi eq, %arg2, %c0_i32 : i32
    %1 = arith.extui %0 : i1 to i32
    %c0_i32_0 = arith.constant 0 : i32
    %2 = arith.cmpi ne, %1, %c0_i32_0 : i32
    scf.if %2 {
      %cst_10 = arith.constant 0.000000e+00 : f32
      %12 = vector.broadcast %cst_10 : f32 to vector<128x128xf32>
      %c0_11 = arith.constant 0 : index
      %c0_12 = arith.constant 0 : index
      %13 = vector.load %arg7[%c0_11, %c0_12] : memref<128x128xf32, #tpu.memory_space<vmem>>, vector<128x128xf32>
      tpu.vector_store %arg7[%c0_11, %c0_12], %12 {strides = array<i32>} : memref<128x128xf32, #tpu.memory_space<vmem>>, vector<128x128xf32>,
    } else {
    }
    %c0 = arith.constant 0 : index
    %c0_1 = arith.constant 0 : index
    %3 = vector.load %arg7[%c0, %c0_1] : memref<128x128xf32, #tpu.memory_space<vmem>>, vector<128x128xf32>
    %c0_2 = arith.constant 0 : index
    %c0_3 = arith.constant 0 : index
    %4 = vector.load %arg3[%c0_2, %c0_3] : memref<128x128xbf16, #tpu.memory_space<vmem>>, vector<128x128xbf16>
    %c0_4 = arith.constant 0 : index
    %c0_5 = arith.constant 0 : index
    %5 = vector.load %arg4[%c0_4, %c0_5] : memref<128x128xbf16, #tpu.memory_space<vmem>>, vector<128x128xbf16>
    %cst = arith.constant dense<0.000000e+00> : vector<128x128xf32>
    %6 = tpu.matmul %4, %5, %cst {dimension_numbers = #tpu.dot_dimension_numbers<[1], [0], [0], [1], [0, 0, 1, 1], [], []>} : vector<128x128xbf16>, vector<128x128xbf16>, vector<128x128xf32> -> vector<128x128xf32>
    %7 = arith.addf %3, %6 : vector<128x128xf32>
    %c0_6 = arith.constant 0 : index
    %c0_7 = arith.constant 0 : index
    %8 = vector.load %arg7[%c0_6, %c0_7] : memref<128x128xf32, #tpu.memory_space<vmem>>, vector<128x128xf32>
    tpu.vector_store %arg7[%c0_6, %c0_7], %7 {strides = array<i32>} : memref<128x128xf32, #tpu.memory_space<vmem>>, vector<128x128xf32>,
    %c0_i32_8 = arith.constant 0 : i32
    %9 = arith.cmpi eq, %arg2, %c0_i32_8 : i32
    %10 = arith.extui %9 : i1 to i32
    %c0_i32_9 = arith.constant 0 : i32
    %11 = arith.cmpi ne, %10, %c0_i32_9 : i32
    scf.if %11 {
      %c0_10 = arith.constant 0 : index
      %c0_11 = arith.constant 0 : index
      %12 = vector.load %arg7[%c0_10, %c0_11] : memref<128x128xf32, #tpu.memory_space<vmem>>, vector<128x128xf32>
      %c0_12 = arith.constant 0 : index
      %c0_13 = arith.constant 0 : index
      %13 = vector.load %arg5[%c0_12, %c0_13] : memref<1x128xf32, #tpu.memory_space<vmem>>, vector<1x128xf32>
      %14 = vector.broadcast %13 : vector<1x128xf32> to vector<128x128xf32>
      %15 = arith.addf %12, %14 : vector<128x128xf32>
      %cst_14 = arith.constant 1.000000e-01 : f32
      %16 = vector.broadcast %cst_14 : f32 to vector<128x128xf32>
      %17 = arith.mulf %16, %15 : vector<128x128xf32>
      %18 = arith.maximumf %15, %17 : vector<128x128xf32>
      %c0_15 = arith.constant 0 : index
      %c0_16 = arith.constant 0 : index
      %19 = vector.load %arg6[%c0_15, %c0_16] : memref<128x128xf32, #tpu.memory_space<vmem>>, vector<128x128xf32>
      tpu.vector_store %arg6[%c0_15, %c0_16], %18 {strides = array<i32>} : memref<128x128xf32, #tpu.memory_space<vmem>>, vector<128x128xf32>,
    } else {
    }
    return
  }
  func.func @transform_0(%arg0: i32, %arg1: i32, %arg2: i32) -> (i32, i32) {
    %c0_i32 = arith.constant 0 : i32
    return %arg0, %arg2 : i32, i32
  }
  func.func @transform_1(%arg0: i32, %arg1: i32, %arg2: i32) -> (i32, i32) {
    %c0_i32 = arith.constant 0 : i32
    return %arg2, %arg1 : i32, i32
  }
  func.func @transform_2(%arg0: i32, %arg1: i32, %arg2: i32) -> (i32, i32) {
    %c0_i32 = arith.constant 0 : i32
    %c0_i32_0 = arith.constant 0 : i32
    return %c0_i32, %arg1 : i32, i32
  }
  func.func @transform_3(%arg0: i32, %arg1: i32, %arg2: i32) -> (i32, i32) {
    %c0_i32 = arith.constant 0 : i32
    return %arg0, %arg1 : i32, i32
  }
}

</mosaic_0001>

<llo_original>
// kernel: conv_bn_lrelu_layer.1
$region0: #{conv_bn_lrelu_layer.1}
  #allocation0 [shape = 'u32[]', space=smem, size = 0x4, offset = 0x4, fixed_abs, tag = 'smem constant byte address 0x4 - core index']
  #allocation1 [shape = 'u32[144,128]{1,0:T(1,128)}', space=vmem, size = 0x12000, scoped, tag = 'internal scratch']
  #allocation2 [shape = 'f32[128,128]{1,0:T(8,128)}', space=vmem, size = 0x10000, scoped, tag = 'scratch operand']
  %s0 = inlined_call_operand.vmem [shape: bf16[128,128], index: 0, kind: input, shape index: {}]
  %s1 = inlined_call_operand.vmem [shape: bf16[128,128], index: 1, kind: input, shape index: {}]
  %s2 = inlined_call_operand.vmem [shape: f32[1,128], index: 2, kind: input, shape index: {}]
  %s3 = inlined_call_operand.vmem [shape: f32[128,128], index: 3, kind: output, shape index: {}]
  %s4 = sld [smem:[#allocation0]]
  $region30: #{conv_bn_lrelu_layer.1} parent=0
    _
  %s6 = ssub.s32 1, %s4
  %s7 = scalar_select 0, %s6, %s4
  // Predicated region
  $region2: #{conv_bn_lrelu_layer.1} parent=0 // pred_check
    _
  $region3: #{conv_bn_lrelu_layer.1} parent=0 // pred_check_branch
    %9 = sbr.rel (0) target = $region5
  $region4: #{conv_bn_lrelu_layer.1} parent=0 // pred_region
    _
  $region5: #{conv_bn_lrelu_layer.1} parent=0 // pred_fallthru
    _
  // Predicated region
  $region6: #{conv_bn_lrelu_layer.1} parent=0 // pred_check
    _
  $region7: #{conv_bn_lrelu_layer.1} parent=0 // pred_check_branch
    %11 = sbr.rel (0) target = $region9
  $region8: #{conv_bn_lrelu_layer.1} parent=0 // pred_region
    _
  $region9: #{conv_bn_lrelu_layer.1} parent=0 // pred_fallthru
    _
  // Predicated region
  $region10: #{conv_bn_lrelu_layer.1} parent=0 // pred_check
    _
  $region11: #{conv_bn_lrelu_layer.1} parent=0 // pred_check_branch
    %13 = sbr.rel (0) target = $region13
  $region12: #{conv_bn_lrelu_layer.1} parent=0 // pred_region
    _
  $region13: #{conv_bn_lrelu_layer.1} parent=0 // pred_fallthru
    _
  %p15 = scmp.eq.s32.totalorder 0, 0
  // Predicated region
  $region14: #{conv_bn_lrelu_layer.1} parent=0 // pred_check
    %p16 = pneg %p15
  $region15: #{conv_bn_lrelu_layer.1} parent=0 // pred_check_branch
    %18 = sbr.rel (%p16) target = $region17
  $region16: #{conv_bn_lrelu_layer.1} parent=0 // pred_region
    %19 = vst [vmem:[#allocation2] sm:$0xff] 0.0
    %20 = vst [vmem:[#allocation2 + $0x8] sm:$0xff] 0.0
    %21 = vst [vmem:[#allocation2 + $0x10] sm:$0xff] 0.0
    %22 = vst [vmem:[#allocation2 + $0x18] sm:$0xff] 0.0
    %23 = vst [vmem:[#allocation2 + $0x20] sm:$0xff] 0.0
    %24 = vst [vmem:[#allocation2 + $0x28] sm:$0xff] 0.0
    %25 = vst [vmem:[#allocation2 + $0x30] sm:$0xff] 0.0
    %26 = vst [vmem:[#allocation2 + $0x38] sm:$0xff] 0.0
    %27 = vst [vmem:[#allocation2 + $0x40] sm:$0xff] 0.0
    %28 = vst [vmem:[#allocation2 + $0x48] sm:$0xff] 0.0
    %29 = vst [vmem:[#allocation2 + $0x50] sm:$0xff] 0.0
    %30 = vst [vmem:[#allocation2 + $0x58] sm:$0xff] 0.0
    %31 = vst [vmem:[#allocation2 + $0x60] sm:$0xff] 0.0
    %32 = vst [vmem:[#allocation2 + $0x68] sm:$0xff] 0.0
    %33 = vst [vmem:[#allocation2 + $0x70] sm:$0xff] 0.0
    %34 = vst [vmem:[#allocation2 + $0x78] sm:$0xff] 0.0
  $region17: #{conv_bn_lrelu_layer.1} parent=0 // pred_fallthru
    _
  %v35 = vld [vmem:[#allocation2] sm:$0xff]
  %v36 = vld [vmem:[#allocation2 + $0x8] sm:$0xff]
  %v37 = vld [vmem:[#allocation2 + $0x10] sm:$0xff]
  %v38 = vld [vmem:[#allocation2 + $0x18] sm:$0xff]
  %v39 = vld [vmem:[#allocation2 + $0x20] sm:$0xff]
  %v40 = vld [vmem:[#allocation2 + $0x28] sm:$0xff]
  %v41 = vld [vmem:[#allocation2 + $0x30] sm:$0xff]
  %v42 = vld [vmem:[#allocation2 + $0x38] sm:$0xff]
  %v43 = vld [vmem:[#allocation2 + $0x40] sm:$0xff]
  %v44 = vld [vmem:[#allocation2 + $0x48] sm:$0xff]
  %v45 = vld [vmem:[#allocation2 + $0x50] sm:$0xff]
  %v46 = vld [vmem:[#allocation2 + $0x58] sm:$0xff]
  %v47 = vld [vmem:[#allocation2 + $0x60] sm:$0xff]
  %v48 = vld [vmem:[#allocation2 + $0x68] sm:$0xff]
  %v49 = vld [vmem:[#allocation2 + $0x70] sm:$0xff]
  %v50 = vld [vmem:[#allocation2 + $0x78] sm:$0xff]
  %v51 = vld [vmem:[%s0] sm:$0xf]
  %v52 = vld [vmem:[%s0 + $0x4] sm:$0xf]
  %v53 = vld [vmem:[%s0 + $0x8] sm:$0xf]
  %v54 = vld [vmem:[%s0 + $0xc] sm:$0xf]
  %v55 = vld [vmem:[%s0 + $0x10] sm:$0xf]
  %v56 = vld [vmem:[%s0 + $0x14] sm:$0xf]
  %v57 = vld [vmem:[%s0 + $0x18] sm:$0xf]
  %v58 = vld [vmem:[%s0 + $0x1c] sm:$0xf]
  %v59 = vld [vmem:[%s0 + $0x20] sm:$0xf]
  %v60 = vld [vmem:[%s0 + $0x24] sm:$0xf]
  %v61 = vld [vmem:[%s0 + $0x28] sm:$0xf]
  %v62 = vld [vmem:[%s0 + $0x2c] sm:$0xf]
  %v63 = vld [vmem:[%s0 + $0x30] sm:$0xf]
  %v64 = vld [vmem:[%s0 + $0x34] sm:$0xf]
  %v65 = vld [vmem:[%s0 + $0x38] sm:$0xf]
  %v66 = vld [vmem:[%s0 + $0x3c] sm:$0xf]
  %v67 = vld [vmem:[%s1] sm:$0xf]
  %v68 = vld [vmem:[%s1 + $0x4] sm:$0xf]
  %v69 = vld [vmem:[%s1 + $0x8] sm:$0xf]
  %v70 = vld [vmem:[%s1 + $0xc] sm:$0xf]
  %v71 = vld [vmem:[%s1 + $0x10] sm:$0xf]
  %v72 = vld [vmem:[%s1 + $0x14] sm:$0xf]
  %v73 = vld [vmem:[%s1 + $0x18] sm:$0xf]
  %v74 = vld [vmem:[%s1 + $0x1c] sm:$0xf]
  %v75 = vld [vmem:[%s1 + $0x20] sm:$0xf]
  %v76 = vld [vmem:[%s1 + $0x24] sm:$0xf]
  %v77 = vld [vmem:[%s1 + $0x28] sm:$0xf]
  %v78 = vld [vmem:[%s1 + $0x2c] sm:$0xf]
  %v79 = vld [vmem:[%s1 + $0x30] sm:$0xf]
  %v80 = vld [vmem:[%s1 + $0x34] sm:$0xf]
  %v81 = vld [vmem:[%s1 + $0x38] sm:$0xf]
  %v82 = vld [vmem:[%s1 + $0x3c] sm:$0xf]
  %v99 = vunpack.c.l.b16 %v51
  %v100 = vunpack.c.l.b16 %v52
  %v101 = vunpack.c.l.b16 %v53
  %v102 = vunpack.c.l.b16 %v54
  %v103 = vunpack.c.l.b16 %v55
  %v104 = vunpack.c.l.b16 %v56
  %v105 = vunpack.c.l.b16 %v57
  %v106 = vunpack.c.l.b16 %v58
  %v107 = vunpack.c.l.b16 %v59
  %v108 = vunpack.c.l.b16 %v60
  %v109 = vunpack.c.l.b16 %v61
  %v110 = vunpack.c.l.b16 %v62
  %v111 = vunpack.c.l.b16 %v63
  %v112 = vunpack.c.l.b16 %v64
  %v113 = vunpack.c.l.b16 %v65
  %v114 = vunpack.c.l.b16 %v66
  %v115 = vpack.c.b16 %v100, %v99
  %v116 = vpack.c.b16 %v102, %v101
  %v117 = vpack.c.b16 %v104, %v103
  %v118 = vpack.c.b16 %v106, %v105
  %v119 = vpack.c.b16 %v108, %v107
  %v120 = vpack.c.b16 %v110, %v109
  %v121 = vpack.c.b16 %v112, %v111
  %v122 = vpack.c.b16 %v114, %v113
  %v147 = vunpack.c.l.b16 %v67
  %v148 = vunpack.c.l.b16 %v68
  %v149 = vunpack.c.l.b16 %v69
  %v150 = vunpack.c.l.b16 %v70
  %v151 = vunpack.c.l.b16 %v71
  %v152 = vunpack.c.l.b16 %v72
  %v153 = vunpack.c.l.b16 %v73
  %v154 = vunpack.c.l.b16 %v74
  %v155 = vunpack.c.l.b16 %v75
  %v156 = vunpack.c.l.b16 %v76
  %v157 = vunpack.c.l.b16 %v77
  %v158 = vunpack.c.l.b16 %v78
  %v159 = vunpack.c.l.b16 %v79
  %v160 = vunpack.c.l.b16 %v80
  %v161 = vunpack.c.l.b16 %v81
  %v162 = vunpack.c.l.b16 %v82
  %v163 = vpack.c.b16 %v148, %v147
  %v164 = vpack.c.b16 %v150, %v149
  %v165 = vpack.c.b16 %v152, %v151
  %v166 = vpack.c.b16 %v154, %v153
  %v167 = vpack.c.b16 %v156, %v155
  %v168 = vpack.c.b16 %v158, %v157
  %v169 = vpack.c.b16 %v160, %v159
  %v170 = vpack.c.b16 %v162, %v161
  %179 = vmatprep.subr.bf16.mxu0 0
  %180 = vmatpush1.bf16.msra.mxu0 %v170
  %181 = vmatprep.subr.bf16.mxu0 0
  %182 = vmatpush1.bf16.msra.mxu0 %v169
  %183 = vmatprep.subr.bf16.mxu0 0
  %184 = vmatpush1.bf16.msra.mxu0 %v168
  %185 = vmatprep.subr.bf16.mxu0 0
  %186 = vmatpush1.bf16.msra.mxu0 %v167
  %187 = vmatprep.subr.bf16.mxu0 0
  %188 = vmatpush1.bf16.msra.mxu0 %v166
  %189 = vmatprep.subr.bf16.mxu0 0
  %190 = vmatpush1.bf16.msra.mxu0 %v165
  %191 = vmatprep.subr.bf16.mxu0 0
  %192 = vmatpush1.bf16.msra.mxu0 %v164
  %193 = vmatprep.subr.bf16.mxu0 0
  %194 = vmatpush1.bf16.msra.mxu0 %v163
  %195 = vmatprep.subr.bf16.mxu0 0
  %196 = vmatpush2.bf16.msra.mxu0 0
  %197 = vmatprep.subr.bf16.mxu0 0
  %198 = vmatpush2.bf16.msra.mxu0 0
  %199 = vmatprep.subr.bf16.mxu0 0
  %200 = vmatpush2.bf16.msra.mxu0 0
  %201 = vmatprep.subr.bf16.mxu0 0
  %202 = vmatpush2.bf16.msra.mxu0 0
  %203 = vmatprep.subr.bf16.mxu0 0
  %204 = vmatpush2.bf16.msra.mxu0 0
  %205 = vmatprep.subr.bf16.mxu0 0
  %206 = vmatpush2.bf16.msra.mxu0 0
  %207 = vmatprep.subr.bf16.mxu0 0
  %208 = vmatpush2.bf16.msra.mxu0 0
  %209 = vmatprep.subr.bf16.mxu0 0
  %210 = vmatpush2.bf16.msra.mxu0 0
  %211 = vmatprep.mubr.bf16.mxu0 0
  %212 = vmatmul.mubr.bf16.gmra.mxu0 %v115
  %v213 = vpop.f32.mrf.mxu0
  %v214 = vadd.f32 0.0, %v213
  %v215 = vpop.f32.mrf.mxu0
  %v216 = vpop.f32.mrf.mxu0
  %v217 = vadd.f32 0.0, %v216
  %v218 = vpop.f32.mrf.mxu0
  %219 = vmatprep.mubr.bf16.mxu0 0
  %220 = vmatmul.mubr.bf16.gmra.mxu0 %v116
  %v221 = vpop.f32.mrf.mxu0
  %v222 = vadd.f32 0.0, %v221
  %v223 = vpop.f32.mrf.mxu0
  %v224 = vpop.f32.mrf.mxu0
  %v225 = vadd.f32 0.0, %v224
  %v226 = vpop.f32.mrf.mxu0
  %227 = vmatprep.mubr.bf16.mxu0 0
  %228 = vmatmul.mubr.bf16.gmra.mxu0 %v117
  %v229 = vpop.f32.mrf.mxu0
  %v230 = vadd.f32 0.0, %v229
  %v231 = vpop.f32.mrf.mxu0
  %v232 = vpop.f32.mrf.mxu0
  %v233 = vadd.f32 0.0, %v232
  %v234 = vpop.f32.mrf.mxu0
  %235 = vmatprep.mubr.bf16.mxu0 0
  %236 = vmatmul.mubr.bf16.gmra.mxu0 %v118
  %v237 = vpop.f32.mrf.mxu0
  %v238 = vadd.f32 0.0, %v237
  %v239 = vpop.f32.mrf.mxu0
  %v240 = vpop.f32.mrf.mxu0
  %v241 = vadd.f32 0.0, %v240
  %v242 = vpop.f32.mrf.mxu0
  %243 = vmatprep.mubr.bf16.mxu0 0
  %244 = vmatmul.mubr.bf16.gmra.mxu0 %v119
  %v245 = vpop.f32.mrf.mxu0
  %v246 = vadd.f32 0.0, %v245
  %v247 = vpop.f32.mrf.mxu0
  %v248 = vpop.f32.mrf.mxu0
  %v249 = vadd.f32 0.0, %v248
  %v250 = vpop.f32.mrf.mxu0
  %251 = vmatprep.mubr.bf16.mxu0 0
  %252 = vmatmul.mubr.bf16.gmra.mxu0 %v120
  %v253 = vpop.f32.mrf.mxu0
  %v254 = vadd.f32 0.0, %v253
  %v255 = vpop.f32.mrf.mxu0
  %v256 = vpop.f32.mrf.mxu0
  %v257 = vadd.f32 0.0, %v256
  %v258 = vpop.f32.mrf.mxu0
  %259 = vmatprep.mubr.bf16.mxu0 0
  %260 = vmatmul.mubr.bf16.gmra.mxu0 %v121
  %v261 = vpop.f32.mrf.mxu0
  %v262 = vadd.f32 0.0, %v261
  %v263 = vpop.f32.mrf.mxu0
  %v264 = vpop.f32.mrf.mxu0
  %v265 = vadd.f32 0.0, %v264
  %v266 = vpop.f32.mrf.mxu0
  %267 = vmatprep.mubr.bf16.mxu0 0
  %268 = vmatmul.mubr.bf16.gmra.mxu0 %v122
  %v269 = vpop.f32.mrf.mxu0
  %v270 = vadd.f32 0.0, %v269
  %v271 = vpop.f32.mrf.mxu0
  %v272 = vpop.f32.mrf.mxu0
  %v273 = vadd.f32 0.0, %v272
  %v274 = vpop.f32.mrf.mxu0
  %275 = vdwg.mxu0
  %v276 = vadd.f32 %v35, %v214
  %v277 = vadd.f32 %v36, %v217
  %v278 = vadd.f32 %v37, %v222
  %v279 = vadd.f32 %v38, %v225
  %v280 = vadd.f32 %v39, %v230
  %v281 = vadd.f32 %v40, %v233
  %v282 = vadd.f32 %v41, %v238
  %v283 = vadd.f32 %v42, %v241
  %v284 = vadd.f32 %v43, %v246
  %v285 = vadd.f32 %v44, %v249
  %v286 = vadd.f32 %v45, %v254
  %v287 = vadd.f32 %v46, %v257
  %v288 = vadd.f32 %v47, %v262
  %v289 = vadd.f32 %v48, %v265
  %v290 = vadd.f32 %v49, %v270
  %v291 = vadd.f32 %v50, %v273
  %292 = vst [vmem:[#allocation2] sm:$0xff] %v276
  %293 = vst [vmem:[#allocation2 + $0x8] sm:$0xff] %v277
  %294 = vst [vmem:[#allocation2 + $0x10] sm:$0xff] %v278
  %295 = vst [vmem:[#allocation2 + $0x18] sm:$0xff] %v279
  %296 = vst [vmem:[#allocation2 + $0x20] sm:$0xff] %v280
  %297 = vst [vmem:[#allocation2 + $0x28] sm:$0xff] %v281
  %298 = vst [vmem:[#allocation2 + $0x30] sm:$0xff] %v282
  %299 = vst [vmem:[#allocation2 + $0x38] sm:$0xff] %v283
  %300 = vst [vmem:[#allocation2 + $0x40] sm:$0xff] %v284
  %301 = vst [vmem:[#allocation2 + $0x48] sm:$0xff] %v285
  %302 = vst [vmem:[#allocation2 + $0x50] sm:$0xff] %v286
  %303 = vst [vmem:[#allocation2 + $0x58] sm:$0xff] %v287
  %304 = vst [vmem:[#allocation2 + $0x60] sm:$0xff] %v288
  %305 = vst [vmem:[#allocation2 + $0x68] sm:$0xff] %v289
  %306 = vst [vmem:[#allocation2 + $0x70] sm:$0xff] %v290
  %307 = vst [vmem:[#allocation2 + $0x78] sm:$0xff] %v291
  // Predicated region
  $region18: #{conv_bn_lrelu_layer.1} parent=0 // pred_check
    %p308 = pneg %p15
  $region19: #{conv_bn_lrelu_layer.1} parent=0 // pred_check_branch
    %310 = sbr.rel (%p308) target = $region21
  $region20: #{conv_bn_lrelu_layer.1} parent=0 // pred_region
    %v311 = vld [vmem:[#allocation2] sm:$0xff]
    %v312 = vld [vmem:[#allocation2 + $0x8] sm:$0xff]
    %v313 = vld [vmem:[#allocation2 + $0x10] sm:$0xff]
    %v314 = vld [vmem:[#allocation2 + $0x18] sm:$0xff]
    %v315 = vld [vmem:[#allocation2 + $0x20] sm:$0xff]
    %v316 = vld [vmem:[#allocation2 + $0x28] sm:$0xff]
    %v317 = vld [vmem:[#allocation2 + $0x30] sm:$0xff]
    %v318 = vld [vmem:[#allocation2 + $0x38] sm:$0xff]
    %v319 = vld [vmem:[#allocation2 + $0x40] sm:$0xff]
    %v320 = vld [vmem:[#allocation2 + $0x48] sm:$0xff]
    %v321 = vld [vmem:[#allocation2 + $0x50] sm:$0xff]
    %v322 = vld [vmem:[#allocation2 + $0x58] sm:$0xff]
    %v323 = vld [vmem:[#allocation2 + $0x60] sm:$0xff]
    %v324 = vld [vmem:[#allocation2 + $0x68] sm:$0xff]
    %v325 = vld [vmem:[#allocation2 + $0x70] sm:$0xff]
    %v326 = vld [vmem:[#allocation2 + $0x78] sm:$0xff]
    %v327 = vld [vmem:[%s2] sm:$0x1]
    %v329 = vlaneseq
    %v330 = vshrl.u32 %v329, 7
    %v331 = vsub.s32 0, %v330
    %v332 = vrot.slane %v327, %v331
    %v334 = vadd.f32 %v311, %v332
    %v335 = vadd.f32 %v312, %v332
    %v336 = vadd.f32 %v313, %v332
    %v337 = vadd.f32 %v314, %v332
    %v338 = vadd.f32 %v315, %v332
    %v339 = vadd.f32 %v316, %v332
    %v340 = vadd.f32 %v317, %v332
    %v341 = vadd.f32 %v318, %v332
    %v342 = vadd.f32 %v319, %v332
    %v343 = vadd.f32 %v320, %v332
    %v344 = vadd.f32 %v321, %v332
    %v345 = vadd.f32 %v322, %v332
    %v346 = vadd.f32 %v323, %v332
    %v347 = vadd.f32 %v324, %v332
    %v348 = vadd.f32 %v325, %v332
    %v349 = vadd.f32 %v326, %v332
    %v350 = vmul.f32 %v334, 0.1
    %v351 = vmul.f32 %v335, 0.1
    %v352 = vmul.f32 %v336, 0.1
    %v353 = vmul.f32 %v337, 0.1
    %v354 = vmul.f32 %v338, 0.1
    %v355 = vmul.f32 %v339, 0.1
    %v356 = vmul.f32 %v340, 0.1
    %v357 = vmul.f32 %v341, 0.1
    %v358 = vmul.f32 %v342, 0.1
    %v359 = vmul.f32 %v343, 0.1
    %v360 = vmul.f32 %v344, 0.1
    %v361 = vmul.f32 %v345, 0.1
    %v362 = vmul.f32 %v346, 0.1
    %v363 = vmul.f32 %v347, 0.1
    %v364 = vmul.f32 %v348, 0.1
    %v365 = vmul.f32 %v349, 0.1
    %v366 = vmax.f32 %v334, %v350
    %v367 = vmax.f32 %v335, %v351
    %v368 = vmax.f32 %v336, %v352
    %v369 = vmax.f32 %v337, %v353
    %v370 = vmax.f32 %v338, %v354
    %v371 = vmax.f32 %v339, %v355
    %v372 = vmax.f32 %v340, %v356
    %v373 = vmax.f32 %v341, %v357
    %v374 = vmax.f32 %v342, %v358
    %v375 = vmax.f32 %v343, %v359
    %v376 = vmax.f32 %v344, %v360
    %v377 = vmax.f32 %v345, %v361
    %v378 = vmax.f32 %v346, %v362
    %v379 = vmax.f32 %v347, %v363
    %v380 = vmax.f32 %v348, %v364
    %v381 = vmax.f32 %v349, %v365
    %382 = vst [vmem:[%s3] sm:$0xff] %v366
    %383 = vst [vmem:[%s3 + $0x8] sm:$0xff] %v367
    %384 = vst [vmem:[%s3 + $0x10] sm:$0xff] %v368
    %385 = vst [vmem:[%s3 + $0x18] sm:$0xff] %v369
    %386 = vst [vmem:[%s3 + $0x20] sm:$0xff] %v370
    %387 = vst [vmem:[%s3 + $0x28] sm:$0xff] %v371
    %388 = vst [vmem:[%s3 + $0x30] sm:$0xff] %v372
    %389 = vst [vmem:[%s3 + $0x38] sm:$0xff] %v373
    %390 = vst [vmem:[%s3 + $0x40] sm:$0xff] %v374
    %391 = vst [vmem:[%s3 + $0x48] sm:$0xff] %v375
    %392 = vst [vmem:[%s3 + $0x50] sm:$0xff] %v376
    %393 = vst [vmem:[%s3 + $0x58] sm:$0xff] %v377
    %394 = vst [vmem:[%s3 + $0x60] sm:$0xff] %v378
    %395 = vst [vmem:[%s3 + $0x68] sm:$0xff] %v379
    %396 = vst [vmem:[%s3 + $0x70] sm:$0xff] %v380
    %397 = vst [vmem:[%s3 + $0x78] sm:$0xff] %v381
  $region21: #{conv_bn_lrelu_layer.1} parent=0 // pred_fallthru
    _
  // Predicated region
  $region22: #{conv_bn_lrelu_layer.1} parent=0 // pred_check
    _
  $region23: #{conv_bn_lrelu_layer.1} parent=0 // pred_check_branch
    %399 = sbr.rel (0) target = $region25
  $region24: #{conv_bn_lrelu_layer.1} parent=0 // pred_region
    _
  $region25: #{conv_bn_lrelu_layer.1} parent=0 // pred_fallthru
    _
  // Predicated region
  $region26: #{conv_bn_lrelu_layer.1} parent=0 // pred_check
    _
  $region27: #{conv_bn_lrelu_layer.1} parent=0 // pred_check_branch
    %401 = sbr.rel (0) target = $region29
  $region28: #{conv_bn_lrelu_layer.1} parent=0 // pred_region
    _
  $region29: #{conv_bn_lrelu_layer.1} parent=0 // pred_fallthru
    _

</llo_original>
